<compile_context>
chip_gen: v7x
topology: tpu7x:2x2x1
jax: 0.10.0
libtpu: 0.0.40
codegen_flags: <defaults>
</compile_context>

<pallas_src>
import functools
import math

import jax
import jax.numpy as jnp
from jax import lax
from jax.experimental import pallas as pl
from jax.experimental.pallas import tpu as pltpu

LANES = 128
SUBLANES = 8            # f32 sublane count; shape of the per-quantity accumulator slab
ROW_ALIGN = 16          # row-tile alignment (also valid for 16-bit packed streams)
MAX_ROW_TILE = 2048     # (8, 2048, 128) f32 block = 8 MiB -> 16 MiB double-buffered
STRIP_ROWS = 256        # inner-loop strip; bounds live temporaries to a few MiB
VMEM_LIMIT_BYTES = 32 * 1024 * 1024
# NOTE: pl.Buffered(3) on the input (v6e suggestion) intentionally skipped: low
# single-digit % and it eats into the v7x 64 MiB VMEM budget at this tile size.


def _round_up(x, n):
    return ((x + n - 1) // n) * n


@functools.lru_cache(maxsize=None)
def _num_tensorcores() -> int:
    """Best-effort TensorCores-per-device (2 on v7x, 1 on v5e/v6e). Falls back to 1."""
    try:
        info = pltpu.get_tpu_info()
        for name in ("num_cores", "core_count", "num_tensorcores",
                     "tensor_core_count", "num_cores_per_chip", "cores_per_chip"):
            v = getattr(info, name, None)
            if isinstance(v, int) and v in (1, 2):
                return v
    except Exception:
        pass
    try:
        kind = jax.devices()[0].device_kind.lower()
        if "7x" in kind or "v7" in kind:
            return 2
    except Exception:
        pass
    return 1


def _star_loss_kernel(x_ref, out_ref, *, strip, n_strips):
    """x_ref:  (8, row_tile, 128) component-major tile
         rows = [px, py, tx, ty, cov_a, cov_b, cov_c, cov_d]
       out_ref: (1, 5, 8, 128) per-core partial-sum accumulator, resident across
         the reduction (tile) axis:
         slots = [sum rsqrt(lam_p), sum rsqrt(lam_m), sum rp^2, sum rm^2, sum tr]
       Padded elements carry identity cov and zero pred/target so they add an
       exactly-known (1, 1, 0, 0, 2); no per-element validity mask needed."""
    t = pl.program_id(1)

    @pl.when(t == 0)
    def _init():
        out_ref[...] = jnp.zeros_like(out_ref)

    def collapse(v):  # (strip, 128) -> (8, 128): pure in-register VPU adds
        return jnp.sum(v.reshape(strip // SUBLANES, SUBLANES, LANES), axis=0)

    def strip_body(s, carry):
        wp_a, wm_a, dp_a, dm_a, tr_a = carry
        idx = s * strip
        if not isinstance(idx, int):          # fori_loop index: hint alignment
            idx = pl.multiple_of(idx, SUBLANES)
        sl = pl.ds(idx, strip)

        def ld(k):
            return x_ref[k, sl, :].astype(jnp.float32)

        px, py = ld(0), ld(1)
        tx, ty = ld(2), ld(3)
        a, b = ld(4), ld(5)
        cc, d = ld(6), ld(7)

        # Closed-form eigenvalues of a general 2x2 (real branch).
        # TODO(synk): complex-eigenvalue branch of torch.linalg.eig (non-real
        # spectrum) is not reproduced; covariances are assumed to have real spectra.
        tr = a + d
        det = a * d - b * cc
        disc = tr * tr - 4.0 * det
        sq = jnp.sqrt(jnp.maximum(disc, 0.0))
        lam_p = 0.5 * (tr + sq)
        lam_m = 0.5 * (tr - sq)

        def eigvec(lam, fb_x, fb_y):
            # Two candidate (unnormalized) eigenvectors of [[a,b],[c,d]] for lam:
            #   (b, lam - a)  and  (lam - d, c); pick the better-conditioned one.
            # Normalization is folded into the residual via reciprocal(|v|^2).
            v1x, v1y = b, lam - a
            v2x, v2y = lam - d, cc
            n1 = v1x * v1x + v1y * v1y
            n2 = v2x * v2x + v2y * v2y
            use1 = n1 >= n2
            vx = jnp.where(use1, v1x, v2x)
            vy = jnp.where(use1, v1y, v2y)
            nrm2 = jnp.where(use1, n1, n2)
            degen = nrm2 <= 1e-30
            vx = jnp.where(degen, fb_x, vx)
            vy = jnp.where(degen, fb_y, vy)
            nrm2 = jnp.where(degen, 1.0, nrm2)
            return vx, vy, nrm2

        vpx, vpy, np2 = eigvec(lam_p, 1.0, 0.0)
        vmx, vmy, nm2 = eigvec(lam_m, 0.0, 1.0)

        dx = px - tx
        dy = py - ty
        sp = vpx * dx + vpy * dy
        sm = vmx * dx + vmy * dy
        rp2 = sp * sp * pl.reciprocal(np2, approx=True)   # EUP slot (free-ish)
        rm2 = sm * sm * pl.reciprocal(nm2, approx=True)

        # Clamp guards lam rounding to tiny negatives for PSD-near-singular cov.
        # '+ epsilon' is hoisted to the wrapper scalar combine.
        w_p = lax.rsqrt(jnp.maximum(lam_p, 1e-30))
        w_m = lax.rsqrt(jnp.maximum(lam_m, 1e-30))

        return (wp_a + collapse(w_p), wm_a + collapse(w_m),
                dp_a + collapse(rp2), dm_a + collapse(rm2),
                tr_a + collapse(tr))

    zeros = jnp.zeros((SUBLANES, LANES), jnp.float32)
    init = (zeros, zeros, zeros, zeros, zeros)
    if n_strips == 1:
        wp_a, wm_a, dp_a, dm_a, tr_a = strip_body(0, init)
    else:
        wp_a, wm_a, dp_a, dm_a, tr_a = lax.fori_loop(
            0, n_strips, strip_body, init, unroll=True)

    # Direct per-slot accumulation into the resident output block (no jnp.stack).
    out_ref[0, 0] += wp_a
    out_ref[0, 1] += wm_a
    out_ref[0, 2] += dp_a
    out_ref[0, 3] += dm_a
    out_ref[0, 4] += tr_a


@functools.partial(jax.jit, static_argnames=("omega", "epsilon"))
def star_loss(pred, cov, target, *, omega=1.0, epsilon=1e-5):
    """pred, target: (..., 2) float; cov: (..., 2, 2) float. Returns a scalar.

    Only the module defaults: distance='l2', reduction='mean', spatial_dims=2.
    # TODO(synk): distance='l1'/'smooth-l1' and reduction='sum'/'none' not implemented.
    """
    batch_shape = pred.shape[:-1]
    m = math.prod(batch_shape) if batch_shape else 1
    if m == 0:
        return jnp.float32(jnp.nan)   # torch.mean over an empty tensor -> nan

    # Stream in the source precision when it is a 16-bit float (halves HBM
    # bytes); otherwise stream f32. All arithmetic is f32 in-kernel.
    src_dt = jnp.result_type(pred.dtype, target.dtype, cov.dtype)
    if jnp.issubdtype(src_dt, jnp.floating) and jnp.dtype(src_dt).itemsize == 2:
        pack_dt = src_dt
    else:
        pack_dt = jnp.float32

    ncores = _num_tensorcores()

    # Static tiling parameters.
    rows = pl.cdiv(m, LANES)                       # rows of 128 elements
    rows_per_core = pl.cdiv(rows, ncores)
    row_tile = min(MAX_ROW_TILE, _round_up(rows_per_core, ROW_ALIGN))
    if row_tile > STRIP_ROWS:
        row_tile = _round_up(row_tile, STRIP_ROWS)
        strip = STRIP_ROWS
    else:
        strip = row_tile
    n_strips = row_tile // strip
    tiles_per_core = pl.cdiv(rows_per_core, row_tile)
    rows_pad = ncores * tiles_per_core * row_tile
    m_pad = rows_pad * LANES
    n_pad = m_pad - m

    # Component-major pack (8, rows_pad, 128): rows = [px,py,tx,ty,a,b,c,d].
    # Padding: identity covariance, zero pred/target (exact, correctable
    # contribution; no in-kernel mask). allow_input_fusion below lets XLA fuse
    # this producer into the pallas_call operand instead of materializing a
    # second full HBM copy of the data.
    p2 = pred.reshape(m, 2).astype(pack_dt)
    t2 = target.reshape(m, 2).astype(pack_dt)
    c4 = cov.reshape(m, 4).astype(pack_dt)
    comps = jnp.concatenate([p2, t2, c4], axis=-1)          # (m, 8)
    if n_pad:
        pad_row = jnp.array([0, 0, 0, 0, 1, 0, 0, 1], pack_dt)
        comps = jnp.concatenate(
            [comps, jnp.broadcast_to(pad_row, (n_pad, 8))], axis=0)
    packed = comps.reshape(rows_pad, LANES, 8).transpose(2, 0, 1)

    kernel = functools.partial(_star_loss_kernel, strip=strip, n_strips=n_strips)

    if ncores > 1:
        dim_sem = (pltpu.CORE_PARALLEL, pltpu.ARBITRARY)   # split rows across TCs (v7x)
    else:
        dim_sem = ("arbitrary", "arbitrary")

    partials = pl.pallas_call(
        kernel,
        out_shape=jax.ShapeDtypeStruct((ncores, 5, SUBLANES, LANES), jnp.float32),
        grid_spec=pltpu.PrefetchScalarGridSpec(
            num_scalar_prefetch=0,
            grid=(ncores, tiles_per_core),
            in_specs=[pl.BlockSpec(
                (8, row_tile, LANES),
                lambda c, t: (0, c * tiles_per_core + t, 0))],
            out_specs=pl.BlockSpec(
                (1, 5, SUBLANES, LANES), lambda c, t: (c, 0, 0, 0)),
        ),
        compiler_params=pltpu.CompilerParams(
            dimension_semantics=dim_sem,
            vmem_limit_bytes=VMEM_LIMIT_BYTES,
            allow_input_fusion=[True]),
    )(packed)

    # Tiny final reduce + scalar combine in the wrapper.
    # Exact padding correction: each padded element contributed (1, 1, 0, 0, 2).
    sums = jnp.sum(partials, axis=(0, 2, 3))                # (5,)
    w_p = sums[0] - n_pad + epsilon * m                     # sum_b (rsqrt(lam_p)+eps)
    w_m = sums[1] - n_pad + epsilon * m
    trace_sum = sums[4] - 2.0 * n_pad
    loss_sum = w_p * sums[2] + w_m * sums[3] + 0.5 * omega * trace_sum
    return loss_sum / m                                     # reduction='mean'


def _reference_star_loss(pred, cov, target, *, omega=1.0, epsilon=1e-5):
    """Pure-JAX reference using eigh (cov is symmetric PSD in the test)."""
    lam, vecs = jnp.linalg.eigh(cov.astype(jnp.float32))       # (..., 2), (..., 2, 2)
    diff = (pred - target).astype(jnp.float32)                  # (..., 2)
    proj = jnp.einsum("...dk,...d->...k", vecs, diff)           # (..., 2)
    d_k = jnp.sum(proj * proj, axis=tuple(range(proj.ndim - 1)))  # (2,) global sums
    w = 1.0 / jnp.sqrt(lam) + epsilon                            # (..., 2)
    loss = jnp.sum(w * d_k, axis=-1) + 0.5 * omega * jnp.sum(lam, axis=-1)
    return jnp.mean(loss)


if __name__ == "__main__":
    B, N, D = 2, 8, 2  # batch, landmarks, spatial_dims
    key = jax.random.PRNGKey(0)
    k1, k2, k3 = jax.random.split(key, 3)

    pred = jax.random.normal(k1, (B, N, D), dtype=jnp.float32)
    target = jax.random.normal(k2, (B, N, D), dtype=jnp.float32)
    # Symmetric positive-definite covariance per landmark.
    A = jax.random.normal(k3, (B, N, D, D), dtype=jnp.float32)
    cov = jnp.einsum("bnij,bnkj->bnik", A, A) + 0.1 * jnp.eye(D, dtype=jnp.float32)

    out = jax.block_until_ready(star_loss(pred, cov, target))
    ref = jax.block_until_ready(_reference_star_loss(pred, cov, target))
    if not jnp.allclose(out, ref, rtol=2e-3, atol=1e-3):
        raise AssertionError(f"mismatch: kernel={out} ref={ref}")

    print("KERNEL_OK")
</pallas_src>

<mosaic_0001>
module attributes {stable_mosaic.version = 11 : i64} {
  func.func @_star_loss_kernel(%arg0: i32, %arg1: i32, %arg2: memref<8x16x128xf32, #tpu.memory_space<vmem>>, %arg3: memref<1x5x8x128xf32, #tpu.memory_space<vmem>>) attributes {dimension_semantics = [#tpu.dimension_semantics<arbitrary>, #tpu.dimension_semantics<arbitrary>], iteration_bounds = array<i64: 1, 1>, scalar_prefetch = 0 : i64, scratch_operands = 0 : i64, tpu.core_type = #tpu.core_type<tc>, window_params = [{transform_indices = @transform_0, window_bounds = array<i64: 8, 16, 128>}, {transform_indices = @transform_1, window_bounds = array<i64: 1, 5, 8, 128>}]} {
    %c0_i32 = arith.constant 0 : i32
    %0 = arith.cmpi eq, %arg1, %c0_i32 : i32
    %1 = arith.extui %0 : i1 to i32
    %c0_i32_0 = arith.constant 0 : i32
    %2 = arith.cmpi ne, %1, %c0_i32_0 : i32
    scf.if %2 {
      %cst_76 = arith.constant 0.000000e+00 : f32
      %142 = vector.broadcast %cst_76 : f32 to vector<1x5x8x128xf32>
      %c0_77 = arith.constant 0 : index
      %c0_78 = arith.constant 0 : index
      %c0_79 = arith.constant 0 : index
      %c0_80 = arith.constant 0 : index
      %143 = vector.load %arg3[%c0_77, %c0_78, %c0_79, %c0_80] : memref<1x5x8x128xf32, #tpu.memory_space<vmem>>, vector<1x5x8x128xf32>
      tpu.vector_store %arg3[%c0_77, %c0_78, %c0_79, %c0_80], %142 {strides = array<i32>} : memref<1x5x8x128xf32, #tpu.memory_space<vmem>>, vector<1x5x8x128xf32>,
    } else {
    }
    %cst = arith.constant 0.000000e+00 : f32
    %3 = vector.broadcast %cst : f32 to vector<8x128xf32>
    %c0 = arith.constant 0 : index
    %c0_1 = arith.constant 0 : index
    %c0_2 = arith.constant 0 : index
    %4 = vector.load %arg2[%c0, %c0_1, %c0_2] : memref<8x16x128xf32, #tpu.memory_space<vmem>>, vector<1x16x128xf32>
    %5 = vector.shape_cast %4 : vector<1x16x128xf32> to vector<16x128xf32>
    %c1 = arith.constant 1 : index
    %c0_3 = arith.constant 0 : index
    %c0_4 = arith.constant 0 : index
    %6 = vector.load %arg2[%c1, %c0_3, %c0_4] : memref<8x16x128xf32, #tpu.memory_space<vmem>>, vector<1x16x128xf32>
    %7 = vector.shape_cast %6 : vector<1x16x128xf32> to vector<16x128xf32>
    %c2 = arith.constant 2 : index
    %c0_5 = arith.constant 0 : index
    %c0_6 = arith.constant 0 : index
    %8 = vector.load %arg2[%c2, %c0_5, %c0_6] : memref<8x16x128xf32, #tpu.memory_space<vmem>>, vector<1x16x128xf32>
    %9 = vector.shape_cast %8 : vector<1x16x128xf32> to vector<16x128xf32>
    %c3 = arith.constant 3 : index
    %c0_7 = arith.constant 0 : index
    %c0_8 = arith.constant 0 : index
    %10 = vector.load %arg2[%c3, %c0_7, %c0_8] : memref<8x16x128xf32, #tpu.memory_space<vmem>>, vector<1x16x128xf32>
    %11 = vector.shape_cast %10 : vector<1x16x128xf32> to vector<16x128xf32>
    %c4 = arith.constant 4 : index
    %c0_9 = arith.constant 0 : index
    %c0_10 = arith.constant 0 : index
    %12 = vector.load %arg2[%c4, %c0_9, %c0_10] : memref<8x16x128xf32, #tpu.memory_space<vmem>>, vector<1x16x128xf32>
    %13 = vector.shape_cast %12 : vector<1x16x128xf32> to vector<16x128xf32>
    %c5 = arith.constant 5 : index
    %c0_11 = arith.constant 0 : index
    %c0_12 = arith.constant 0 : index
    %14 = vector.load %arg2[%c5, %c0_11, %c0_12] : memref<8x16x128xf32, #tpu.memory_space<vmem>>, vector<1x16x128xf32>
    %15 = vector.shape_cast %14 : vector<1x16x128xf32> to vector<16x128xf32>
    %c6 = arith.constant 6 : index
    %c0_13 = arith.constant 0 : index
    %c0_14 = arith.constant 0 : index
    %16 = vector.load %arg2[%c6, %c0_13, %c0_14] : memref<8x16x128xf32, #tpu.memory_space<vmem>>, vector<1x16x128xf32>
    %17 = vector.shape_cast %16 : vector<1x16x128xf32> to vector<16x128xf32>
    %c7 = arith.constant 7 : index
    %c0_15 = arith.constant 0 : index
    %c0_16 = arith.constant 0 : index
    %18 = vector.load %arg2[%c7, %c0_15, %c0_16] : memref<8x16x128xf32, #tpu.memory_space<vmem>>, vector<1x16x128xf32>
    %19 = vector.shape_cast %18 : vector<1x16x128xf32> to vector<16x128xf32>
    %20 = arith.addf %13, %19 : vector<16x128xf32>
    %21 = arith.mulf %13, %19 : vector<16x128xf32>
    %22 = arith.mulf %15, %17 : vector<16x128xf32>
    %23 = arith.subf %21, %22 : vector<16x128xf32>
    %24 = arith.mulf %20, %20 : vector<16x128xf32>
    %cst_17 = arith.constant 4.000000e+00 : f32
    %25 = vector.broadcast %cst_17 : f32 to vector<16x128xf32>
    %26 = arith.mulf %25, %23 : vector<16x128xf32>
    %27 = arith.subf %24, %26 : vector<16x128xf32>
    %cst_18 = arith.constant 0.000000e+00 : f32
    %28 = vector.broadcast %cst_18 : f32 to vector<16x128xf32>
    %29 = arith.maximumf %27, %28 : vector<16x128xf32>
    %30 = math.sqrt %29 : vector<16x128xf32>
    %31 = arith.addf %20, %30 : vector<16x128xf32>
    %cst_19 = arith.constant 5.000000e-01 : f32
    %32 = vector.broadcast %cst_19 : f32 to vector<16x128xf32>
    %33 = arith.mulf %32, %31 : vector<16x128xf32>
    %34 = arith.subf %20, %30 : vector<16x128xf32>
    %cst_20 = arith.constant 5.000000e-01 : f32
    %35 = vector.broadcast %cst_20 : f32 to vector<16x128xf32>
    %36 = arith.mulf %35, %34 : vector<16x128xf32>
    %37 = arith.subf %33, %13 : vector<16x128xf32>
    %38 = arith.subf %33, %19 : vector<16x128xf32>
    %39 = arith.mulf %15, %15 : vector<16x128xf32>
    %40 = arith.mulf %37, %37 : vector<16x128xf32>
    %41 = arith.addf %39, %40 : vector<16x128xf32>
    %42 = arith.mulf %38, %38 : vector<16x128xf32>
    %43 = arith.mulf %17, %17 : vector<16x128xf32>
    %44 = arith.addf %42, %43 : vector<16x128xf32>
    %45 = arith.cmpf oge, %41, %44 : vector<16x128xf32>
    %46 = arith.select %45, %15, %38 : vector<16x128xi1>, vector<16x128xf32>
    %47 = arith.select %45, %37, %17 : vector<16x128xi1>, vector<16x128xf32>
    %48 = arith.select %45, %41, %44 : vector<16x128xi1>, vector<16x128xf32>
    %cst_21 = arith.constant 1.000000e-30 : f32
    %49 = vector.broadcast %cst_21 : f32 to vector<16x128xf32>
    %50 = arith.cmpf ole, %48, %49 : vector<16x128xf32>
    %cst_22 = arith.constant 1.000000e+00 : f32
    %51 = vector.broadcast %cst_22 : f32 to vector<16x128xf32>
    %52 = arith.select %50, %51, %46 : vector<16x128xi1>, vector<16x128xf32>
    %cst_23 = arith.constant 0.000000e+00 : f32
    %53 = vector.broadcast %cst_23 : f32 to vector<16x128xf32>
    %54 = arith.select %50, %53, %47 : vector<16x128xi1>, vector<16x128xf32>
    %cst_24 = arith.constant 1.000000e+00 : f32
    %55 = vector.broadcast %cst_24 : f32 to vector<16x128xf32>
    %56 = arith.select %50, %55, %48 : vector<16x128xi1>, vector<16x128xf32>
    %57 = arith.subf %36, %13 : vector<16x128xf32>
    %58 = arith.subf %36, %19 : vector<16x128xf32>
    %59 = arith.mulf %15, %15 : vector<16x128xf32>
    %60 = arith.mulf %57, %57 : vector<16x128xf32>
    %61 = arith.addf %59, %60 : vector<16x128xf32>
    %62 = arith.mulf %58, %58 : vector<16x128xf32>
    %63 = arith.mulf %17, %17 : vector<16x128xf32>
    %64 = arith.addf %62, %63 : vector<16x128xf32>
    %65 = arith.cmpf oge, %61, %64 : vector<16x128xf32>
    %66 = arith.select %65, %15, %58 : vector<16x128xi1>, vector<16x128xf32>
    %67 = arith.select %65, %57, %17 : vector<16x128xi1>, vector<16x128xf32>
    %68 = arith.select %65, %61, %64 : vector<16x128xi1>, vector<16x128xf32>
    %cst_25 = arith.constant 1.000000e-30 : f32
    %69 = vector.broadcast %cst_25 : f32 to vector<16x128xf32>
    %70 = arith.cmpf ole, %68, %69 : vector<16x128xf32>
    %cst_26 = arith.constant 0.000000e+00 : f32
    %71 = vector.broadcast %cst_26 : f32 to vector<16x128xf32>
    %72 = arith.select %70, %71, %66 : vector<16x128xi1>, vector<16x128xf32>
    %cst_27 = arith.constant 1.000000e+00 : f32
    %73 = vector.broadcast %cst_27 : f32 to vector<16x128xf32>
    %74 = arith.select %70, %73, %67 : vector<16x128xi1>, vector<16x128xf32>
    %cst_28 = arith.constant 1.000000e+00 : f32
    %75 = vector.broadcast %cst_28 : f32 to vector<16x128xf32>
    %76 = arith.select %70, %75, %68 : vector<16x128xi1>, vector<16x128xf32>
    %77 = arith.subf %5, %9 : vector<16x128xf32>
    %78 = arith.subf %7, %11 : vector<16x128xf32>
    %79 = arith.mulf %52, %77 : vector<16x128xf32>
    %80 = arith.mulf %54, %78 : vector<16x128xf32>
    %81 = arith.addf %79, %80 : vector<16x128xf32>
    %82 = arith.mulf %72, %77 : vector<16x128xf32>
    %83 = arith.mulf %74, %78 : vector<16x128xf32>
    %84 = arith.addf %82, %83 : vector<16x128xf32>
    %85 = arith.mulf %81, %81 : vector<16x128xf32>
    %86 = tpu.reciprocal %56 {approx = true} : vector<16x128xf32> -> vector<16x128xf32>
    %87 = arith.mulf %85, %86 : vector<16x128xf32>
    %88 = arith.mulf %84, %84 : vector<16x128xf32>
    %89 = tpu.reciprocal %76 {approx = true} : vector<16x128xf32> -> vector<16x128xf32>
    %90 = arith.mulf %88, %89 : vector<16x128xf32>
    %cst_29 = arith.constant 1.000000e-30 : f32
    %91 = vector.broadcast %cst_29 : f32 to vector<16x128xf32>
    %92 = arith.maximumf %33, %91 : vector<16x128xf32>
    %93 = math.rsqrt %92 : vector<16x128xf32>
    %cst_30 = arith.constant 1.000000e-30 : f32
    %94 = vector.broadcast %cst_30 : f32 to vector<16x128xf32>
    %95 = arith.maximumf %36, %94 : vector<16x128xf32>
    %96 = math.rsqrt %95 : vector<16x128xf32>
    %97 = vector.shape_cast %93 : vector<16x128xf32> to vector<2x8x128xf32>
    %cst_31 = arith.constant dense<0.000000e+00> : vector<8x128xf32>
    %98 = vector.multi_reduction <add>, %97, %cst_31 [0] : vector<2x8x128xf32> to vector<8x128xf32>
    %99 = arith.addf %3, %98 : vector<8x128xf32>
    %100 = vector.shape_cast %96 : vector<16x128xf32> to vector<2x8x128xf32>
    %cst_32 = arith.constant dense<0.000000e+00> : vector<8x128xf32>
    %101 = vector.multi_reduction <add>, %100, %cst_32 [0] : vector<2x8x128xf32> to vector<8x128xf32>
    %102 = arith.addf %3, %101 : vector<8x128xf32>
    %103 = vector.shape_cast %87 : vector<16x128xf32> to vector<2x8x128xf32>
    %cst_33 = arith.constant dense<0.000000e+00> : vector<8x128xf32>
    %104 = vector.multi_reduction <add>, %103, %cst_33 [0] : vector<2x8x128xf32> to vector<8x128xf32>
    %105 = arith.addf %3, %104 : vector<8x128xf32>
    %106 = vector.shape_cast %90 : vector<16x128xf32> to vector<2x8x128xf32>
    %cst_34 = arith.constant dense<0.000000e+00> : vector<8x128xf32>
    %107 = vector.multi_reduction <add>, %106, %cst_34 [0] : vector<2x8x128xf32> to vector<8x128xf32>
    %108 = arith.addf %3, %107 : vector<8x128xf32>
    %109 = vector.shape_cast %20 : vector<16x128xf32> to vector<2x8x128xf32>
    %cst_35 = arith.constant dense<0.000000e+00> : vector<8x128xf32>
    %110 = vector.multi_reduction <add>, %109, %cst_35 [0] : vector<2x8x128xf32> to vector<8x128xf32>
    %111 = arith.addf %3, %110 : vector<8x128xf32>
    %c0_36 = arith.constant 0 : index
    %c0_37 = arith.constant 0 : index
    %c0_38 = arith.constant 0 : index
    %c0_39 = arith.constant 0 : index
    %112 = vector.load %arg3[%c0_36, %c0_37, %c0_38, %c0_39] : memref<1x5x8x128xf32, #tpu.memory_space<vmem>>, vector<1x1x8x128xf32>
    %113 = vector.shape_cast %112 : vector<1x1x8x128xf32> to vector<8x128xf32>
    %114 = arith.addf %113, %99 : vector<8x128xf32>
    %c0_40 = arith.constant 0 : index
    %c0_41 = arith.constant 0 : index
    %c0_42 = arith.constant 0 : index
    %c0_43 = arith.constant 0 : index
    %115 = vector.load %arg3[%c0_40, %c0_41, %c0_42, %c0_43] : memref<1x5x8x128xf32, #tpu.memory_space<vmem>>, vector<1x1x8x128xf32>
    %116 = vector.shape_cast %115 : vector<1x1x8x128xf32> to vector<8x128xf32>
    %117 = vector.shape_cast %114 : vector<8x128xf32> to vector<1x1x8x128xf32>
    tpu.vector_store %arg3[%c0_40, %c0_41, %c0_42, %c0_43], %117 {strides = array<i32>} : memref<1x5x8x128xf32, #tpu.memory_space<vmem>>, vector<1x1x8x128xf32>,
    %c0_44 = arith.constant 0 : index
    %c1_45 = arith.constant 1 : index
    %c0_46 = arith.constant 0 : index
    %c0_47 = arith.constant 0 : index
    %118 = vector.load %arg3[%c0_44, %c1_45, %c0_46, %c0_47] : memref<1x5x8x128xf32, #tpu.memory_space<vmem>>, vector<1x1x8x128xf32>
    %119 = vector.shape_cast %118 : vector<1x1x8x128xf32> to vector<8x128xf32>
    %120 = arith.addf %119, %102 : vector<8x128xf32>
    %c0_48 = arith.constant 0 : index
    %c1_49 = arith.constant 1 : index
    %c0_50 = arith.constant 0 : index
    %c0_51 = arith.constant 0 : index
    %121 = vector.load %arg3[%c0_48, %c1_49, %c0_50, %c0_51] : memref<1x5x8x128xf32, #tpu.memory_space<vmem>>, vector<1x1x8x128xf32>
    %122 = vector.shape_cast %121 : vector<1x1x8x128xf32> to vector<8x128xf32>
    %123 = vector.shape_cast %120 : vector<8x128xf32> to vector<1x1x8x128xf32>
    tpu.vector_store %arg3[%c0_48, %c1_49, %c0_50, %c0_51], %123 {strides = array<i32>} : memref<1x5x8x128xf32, #tpu.memory_space<vmem>>, vector<1x1x8x128xf32>,
    %c0_52 = arith.constant 0 : index
    %c2_53 = arith.constant 2 : index
    %c0_54 = arith.constant 0 : index
    %c0_55 = arith.constant 0 : index
    %124 = vector.load %arg3[%c0_52, %c2_53, %c0_54, %c0_55] : memref<1x5x8x128xf32, #tpu.memory_space<vmem>>, vector<1x1x8x128xf32>
    %125 = vector.shape_cast %124 : vector<1x1x8x128xf32> to vector<8x128xf32>
    %126 = arith.addf %125, %105 : vector<8x128xf32>
    %c0_56 = arith.constant 0 : index
    %c2_57 = arith.constant 2 : index
    %c0_58 = arith.constant 0 : index
    %c0_59 = arith.constant 0 : index
    %127 = vector.load %arg3[%c0_56, %c2_57, %c0_58, %c0_59] : memref<1x5x8x128xf32, #tpu.memory_space<vmem>>, vector<1x1x8x128xf32>
    %128 = vector.shape_cast %127 : vector<1x1x8x128xf32> to vector<8x128xf32>
    %129 = vector.shape_cast %126 : vector<8x128xf32> to vector<1x1x8x128xf32>
    tpu.vector_store %arg3[%c0_56, %c2_57, %c0_58, %c0_59], %129 {strides = array<i32>} : memref<1x5x8x128xf32, #tpu.memory_space<vmem>>, vector<1x1x8x128xf32>,
    %c0_60 = arith.constant 0 : index
    %c3_61 = arith.constant 3 : index
    %c0_62 = arith.constant 0 : index
    %c0_63 = arith.constant 0 : index
    %130 = vector.load %arg3[%c0_60, %c3_61, %c0_62, %c0_63] : memref<1x5x8x128xf32, #tpu.memory_space<vmem>>, vector<1x1x8x128xf32>
    %131 = vector.shape_cast %130 : vector<1x1x8x128xf32> to vector<8x128xf32>
    %132 = arith.addf %131, %108 : vector<8x128xf32>
    %c0_64 = arith.constant 0 : index
    %c3_65 = arith.constant 3 : index
    %c0_66 = arith.constant 0 : index
    %c0_67 = arith.constant 0 : index
    %133 = vector.load %arg3[%c0_64, %c3_65, %c0_66, %c0_67] : memref<1x5x8x128xf32, #tpu.memory_space<vmem>>, vector<1x1x8x128xf32>
    %134 = vector.shape_cast %133 : vector<1x1x8x128xf32> to vector<8x128xf32>
    %135 = vector.shape_cast %132 : vector<8x128xf32> to vector<1x1x8x128xf32>
    tpu.vector_store %arg3[%c0_64, %c3_65, %c0_66, %c0_67], %135 {strides = array<i32>} : memref<1x5x8x128xf32, #tpu.memory_space<vmem>>, vector<1x1x8x128xf32>,
    %c0_68 = arith.constant 0 : index
    %c4_69 = arith.constant 4 : index
    %c0_70 = arith.constant 0 : index
    %c0_71 = arith.constant 0 : index
    %136 = vector.load %arg3[%c0_68, %c4_69, %c0_70, %c0_71] : memref<1x5x8x128xf32, #tpu.memory_space<vmem>>, vector<1x1x8x128xf32>
    %137 = vector.shape_cast %136 : vector<1x1x8x128xf32> to vector<8x128xf32>
    %138 = arith.addf %137, %111 : vector<8x128xf32>
    %c0_72 = arith.constant 0 : index
    %c4_73 = arith.constant 4 : index
    %c0_74 = arith.constant 0 : index
    %c0_75 = arith.constant 0 : index
    %139 = vector.load %arg3[%c0_72, %c4_73, %c0_74, %c0_75] : memref<1x5x8x128xf32, #tpu.memory_space<vmem>>, vector<1x1x8x128xf32>
    %140 = vector.shape_cast %139 : vector<1x1x8x128xf32> to vector<8x128xf32>
    %141 = vector.shape_cast %138 : vector<8x128xf32> to vector<1x1x8x128xf32>
    tpu.vector_store %arg3[%c0_72, %c4_73, %c0_74, %c0_75], %141 {strides = array<i32>} : memref<1x5x8x128xf32, #tpu.memory_space<vmem>>, vector<1x1x8x128xf32>,
    return
  }
  func.func @transform_0(%arg0: i32, %arg1: i32) -> (i32, i32, i32) {
    %c1_i32 = arith.constant 1 : i32
    %0 = arith.muli %arg0, %c1_i32 : i32
    %1 = arith.addi %0, %arg1 : i32
    %c0_i32 = arith.constant 0 : i32
    %c0_i32_0 = arith.constant 0 : i32
    %c0_i32_1 = arith.constant 0 : i32
    return %c0_i32, %1, %c0_i32_0 : i32, i32, i32
  }
  func.func @transform_1(%arg0: i32, %arg1: i32) -> (i32, i32, i32, i32) {
    %c0_i32 = arith.constant 0 : i32
    %c0_i32_0 = arith.constant 0 : i32
    %c0_i32_1 = arith.constant 0 : i32
    %c0_i32_2 = arith.constant 0 : i32
    return %arg0, %c0_i32, %c0_i32_0, %c0_i32_1 : i32, i32, i32, i32
  }
}

</mosaic_0001>

<llo_original>
// kernel: star_loss.2
$region0: #{star_loss.2}
  #allocation0 [shape = 'u32[]', space=smem, size = 0x4, offset = 0x4, fixed_abs, tag = 'smem constant byte address 0x4 - core index']
  #allocation1 [shape = 'u32[144,128]{1,0:T(1,128)}', space=vmem, size = 0x12000, scoped, tag = 'internal scratch']
  %s0 = inlined_call_operand.vmem [shape: f32[1,8,16,128], index: 0, kind: input, shape index: {}]
  %s1 = inlined_call_operand.vmem [shape: f32[1,5,8,128], index: 1, kind: output, shape index: {}]
  %s2 = sld [smem:[#allocation0]]
  $region18: #{star_loss.2} parent=0
    _
  %s4 = ssub.s32 1, %s2
  %s5 = scalar_select 0, %s4, %s2
  $region1: #{star_loss.2} parent=0
    #allocation2 [shape = 'u8[65536]{0}', space=vmem, size = 0x10000, dematerialized = true, scoped, tag = 'FusionAdapter Buffer %bitcast_bitcast_fusion.1 = f32[8,16,128]{2,1,0:T(8,128)} fusion(%param_0.4), kind=kLoop, calls=%fused_computation.clone.clone, metadata={op_name="jit(star_loss)/transpose" stack_frame_id=14}']
    // Predicated region
    $region2: #{star_loss.2} parent=1 // pred_check
      _
    $region3: #{star_loss.2} parent=1 // pred_check_branch
      %7 = sbr.rel (0) target = $region5
    $region4: #{star_loss.2} parent=1 // pred_region
      %s8 = sadd.s32 0, 0
      %s9 = smul.u32 2, %s8
      %p10 = scmp.lt.s32.totalorder %s9, 1
      %s11 = scalar_select %p10, %s9, 1
      %s12 = smul.addr %s11, 8
      %s13 = scalar_lea.vmem %s0, %s12
      %s14 = sadd.s32 0, 0
      %s15 = smul.u32 2, %s14
    $region5: #{star_loss.2} parent=1 // pred_fallthru
      _
    %s16 = sadd.s32 0, 0
    %s17 = smul.u32 2, %s16
    %p18 = scmp.lt.s32.totalorder %s17, 1
    %s19 = scalar_select %p18, %s17, 1
    %s20 = smul.addr %s19, 8
    %s21 = scalar_lea.vmem %s0, %s20
    %s22 = sadd.s32 0, 0
    %s23 = smul.u32 2, %s22
    %p24 = scmp.lt.s32.totalorder %s23, 1
    %s25 = scalar_select %p24, %s23, 1
    %s26 = smul.addr %s25, 8
    %s27 = scalar_lea.vmem %s0, %s26
    %s28 = sadd.s32 0, 0
    %s29 = smul.u32 2, %s28
    %v30 = vld [vmem:[%s27] sm:$0xff]
    %32 = vst [vmem:[#allocation2] sm:$0xff] %v30
    %s33 = scalar_lea.vmem %s27, 8
    %v34 = vld [vmem:[%s33] sm:$0xff]
    %s35 = scalar_lea.vmem [#allocation2], 8
    %37 = vst [vmem:[%s35] sm:$0xff] %v34
    %s38 = scalar_lea.vmem %s27, 16
    %v39 = vld [vmem:[%s38] sm:$0xff]
    %s40 = scalar_lea.vmem [#allocation2], 16
    %42 = vst [vmem:[%s40] sm:$0xff] %v39
    %s43 = scalar_lea.vmem %s27, 24
    %v44 = vld [vmem:[%s43] sm:$0xff]
    %s45 = scalar_lea.vmem [#allocation2], 24
    %47 = vst [vmem:[%s45] sm:$0xff] %v44
    %s48 = scalar_lea.vmem %s27, 32
    %v49 = vld [vmem:[%s48] sm:$0xff]
    %s50 = scalar_lea.vmem [#allocation2], 32
    %52 = vst [vmem:[%s50] sm:$0xff] %v49
    %s53 = scalar_lea.vmem %s27, 40
    %v54 = vld [vmem:[%s53] sm:$0xff]
    %s55 = scalar_lea.vmem [#allocation2], 40
    %57 = vst [vmem:[%s55] sm:$0xff] %v54
    %s58 = scalar_lea.vmem %s27, 48
    %v59 = vld [vmem:[%s58] sm:$0xff]
    %s60 = scalar_lea.vmem [#allocation2], 48
    %62 = vst [vmem:[%s60] sm:$0xff] %v59
    %s63 = scalar_lea.vmem %s27, 56
    %v64 = vld [vmem:[%s63] sm:$0xff]
    %s65 = scalar_lea.vmem [#allocation2], 56
    %67 = vst [vmem:[%s65] sm:$0xff] %v64
    %s68 = scalar_lea.vmem %s27, 64
    %v69 = vld [vmem:[%s68] sm:$0xff]
    %s70 = scalar_lea.vmem [#allocation2], 64
    %72 = vst [vmem:[%s70] sm:$0xff] %v69
    %s73 = scalar_lea.vmem %s27, 72
    %v74 = vld [vmem:[%s73] sm:$0xff]
    %s75 = scalar_lea.vmem [#allocation2], 72
    %77 = vst [vmem:[%s75] sm:$0xff] %v74
    %s78 = scalar_lea.vmem %s27, 80
    %v79 = vld [vmem:[%s78] sm:$0xff]
    %s80 = scalar_lea.vmem [#allocation2], 80
    %82 = vst [vmem:[%s80] sm:$0xff] %v79
    %s83 = scalar_lea.vmem %s27, 88
    %v84 = vld [vmem:[%s83] sm:$0xff]
    %s85 = scalar_lea.vmem [#allocation2], 88
    %87 = vst [vmem:[%s85] sm:$0xff] %v84
    %s88 = scalar_lea.vmem %s27, 96
    %v89 = vld [vmem:[%s88] sm:$0xff]
    %s90 = scalar_lea.vmem [#allocation2], 96
    %92 = vst [vmem:[%s90] sm:$0xff] %v89
    %s93 = scalar_lea.vmem %s27, 104
    %v94 = vld [vmem:[%s93] sm:$0xff]
    %s95 = scalar_lea.vmem [#allocation2], 104
    %97 = vst [vmem:[%s95] sm:$0xff] %v94
    %s98 = scalar_lea.vmem %s27, 112
    %v99 = vld [vmem:[%s98] sm:$0xff]
    %s100 = scalar_lea.vmem [#allocation2], 112
    %102 = vst [vmem:[%s100] sm:$0xff] %v99
    %s103 = scalar_lea.vmem %s27, 120
    %v104 = vld [vmem:[%s103] sm:$0xff]
    %s105 = scalar_lea.vmem [#allocation2], 120
    %107 = vst [vmem:[%s105] sm:$0xff] %v104
    %p108 = scmp.eq.s32.totalorder 0, 0
    // Predicated region
    $region6: #{star_loss.2} parent=1 // pred_check
      %p109 = pneg %p108
    $region7: #{star_loss.2} parent=1 // pred_check_branch
      %111 = sbr.rel (%p109) target = $region9
    $region8: #{star_loss.2} parent=1 // pred_region
      %112 = vst [vmem:[%s1] sm:$0xff] 0.0
      %113 = vst [vmem:[%s1 + $0x8] sm:$0xff] 0.0
      %114 = vst [vmem:[%s1 + $0x10] sm:$0xff] 0.0
      %115 = vst [vmem:[%s1 + $0x18] sm:$0xff] 0.0
      %116 = vst [vmem:[%s1 + $0x20] sm:$0xff] 0.0
    $region9: #{star_loss.2} parent=1 // pred_fallthru
      _
    %v117 = vld [vmem:[#allocation2] sm:$0xff]
    %v118 = vld [vmem:[#allocation2 + $0x8] sm:$0xff]
    %s119 = scalar_lea.vmem [#allocation2], 16
    %v120 = vld [vmem:[%s119] sm:$0xff]
    %v121 = vld [vmem:[%s119 + $0x8] sm:$0xff]
    %s122 = scalar_lea.vmem [#allocation2], 32
    %v123 = vld [vmem:[%s122] sm:$0xff]
    %v124 = vld [vmem:[%s122 + $0x8] sm:$0xff]
    %s125 = scalar_lea.vmem [#allocation2], 48
    %v126 = vld [vmem:[%s125] sm:$0xff]
    %v127 = vld [vmem:[%s125 + $0x8] sm:$0xff]
    %s128 = scalar_lea.vmem [#allocation2], 64
    %v129 = vld [vmem:[%s128] sm:$0xff]
    %v130 = vld [vmem:[%s128 + $0x8] sm:$0xff]
    %s131 = scalar_lea.vmem [#allocation2], 80
    %v132 = vld [vmem:[%s131] sm:$0xff]
    %v133 = vld [vmem:[%s131 + $0x8] sm:$0xff]
    %s134 = scalar_lea.vmem [#allocation2], 96
    %v135 = vld [vmem:[%s134] sm:$0xff]
    %v136 = vld [vmem:[%s134 + $0x8] sm:$0xff]
    %s137 = scalar_lea.vmem [#allocation2], 112
    %v138 = vld [vmem:[%s137] sm:$0xff]
    %v139 = vld [vmem:[%s137 + $0x8] sm:$0xff]
    %v140 = vadd.f32 %v129, %v138
    %v141 = vadd.f32 %v130, %v139
    %v142 = vmul.f32 %v129, %v138
    %v143 = vmul.f32 %v130, %v139
    %v144 = vmul.f32 %v132, %v135
    %v145 = vmul.f32 %v133, %v136
    %v146 = vsub.f32 %v142, %v144
    %v147 = vsub.f32 %v143, %v145
    %v148 = vmul.f32 %v140, %v140
    %v149 = vmul.f32 %v141, %v141
    %v150 = vmul.f32 %v146, 4.0
    %v151 = vmul.f32 %v147, 4.0
    %v152 = vsub.f32 %v148, %v150
    %v153 = vsub.f32 %v149, %v151
    %v154 = vmax.f32 %v152, 0.0
    %v155 = vmax.f32 %v153, 0.0
    %v156 = vrsqrt.pop %v154
    %v157 = vmul.f32 %v154, %v156
    %vm158 = vcmp.eq.f32.partialorder %v154, inf
    %v159 = vsel %vm158, %v154, %v157
    %vm160 = vcmp.eq.f32.partialorder %v154, 0.0
    %v161 = vand.u32 %v154, 2147483648
    %v162 = vsel %vm160, %v161, %v159
    %v163 = vrsqrt.pop %v155
    %v164 = vmul.f32 %v155, %v163
    %vm165 = vcmp.eq.f32.partialorder %v155, inf
    %v166 = vsel %vm165, %v155, %v164
    %vm167 = vcmp.eq.f32.partialorder %v155, 0.0
    %v168 = vand.u32 %v155, 2147483648
    %v169 = vsel %vm167, %v168, %v166
    %v170 = vadd.f32 %v140, %v162
    %v171 = vadd.f32 %v141, %v169
    %v172 = vmul.f32 %v170, 0.5
    %v173 = vmul.f32 %v171, 0.5
    %v174 = vsub.f32 %v140, %v162
    %v175 = vsub.f32 %v141, %v169
    %v176 = vmul.f32 %v174, 0.5
    %v177 = vmul.f32 %v175, 0.5
    %v178 = vsub.f32 %v172, %v129
    %v179 = vsub.f32 %v173, %v130
    %v180 = vsub.f32 %v172, %v138
    %v181 = vsub.f32 %v173, %v139
    %v182 = vmul.f32 %v132, %v132
    %v183 = vmul.f32 %v133, %v133
    %v184 = vmul.f32 %v178, %v178
    %v185 = vmul.f32 %v179, %v179
    %v186 = vadd.f32 %v182, %v184
    %v187 = vadd.f32 %v183, %v185
    %v188 = vmul.f32 %v180, %v180
    %v189 = vmul.f32 %v181, %v181
    %v190 = vmul.f32 %v135, %v135
    %v191 = vmul.f32 %v136, %v136
    %v192 = vadd.f32 %v188, %v190
    %v193 = vadd.f32 %v189, %v191
    %vm194 = vcmp.ge.f32.partialorder %v186, %v192
    %vm195 = vcmp.ge.f32.partialorder %v187, %v193
    %v196 = vsel %vm194, %v132, %v180
    %v197 = vsel %vm195, %v133, %v181
    %v198 = vsel %vm194, %v178, %v135
    %v199 = vsel %vm195, %v179, %v136
    %v200 = vsel %vm194, %v186, %v192
    %v201 = vsel %vm195, %v187, %v193
    %vm202 = vcmp.le.f32.partialorder %v200, 1e-30
    %vm203 = vcmp.le.f32.partialorder %v201, 1e-30
    %v204 = vsel %vm202, 1.0, %v196
    %v205 = vsel %vm203, 1.0, %v197
    %v206 = vsel %vm202, 0.0, %v198
    %v207 = vsel %vm203, 0.0, %v199
    %v208 = vsel %vm202, 1.0, %v200
    %v209 = vsel %vm203, 1.0, %v201
    %v210 = vsub.f32 %v176, %v129
    %v211 = vsub.f32 %v177, %v130
    %v212 = vsub.f32 %v176, %v138
    %v213 = vsub.f32 %v177, %v139
    %v214 = vmul.f32 %v210, %v210
    %v215 = vmul.f32 %v211, %v211
    %v216 = vadd.f32 %v182, %v214
    %v217 = vadd.f32 %v183, %v215
    %v218 = vmul.f32 %v212, %v212
    %v219 = vmul.f32 %v213, %v213
    %v220 = vadd.f32 %v218, %v190
    %v221 = vadd.f32 %v219, %v191
    %vm222 = vcmp.ge.f32.partialorder %v216, %v220
    %vm223 = vcmp.ge.f32.partialorder %v217, %v221
    %v224 = vsel %vm222, %v132, %v212
    %v225 = vsel %vm223, %v133, %v213
    %v226 = vsel %vm222, %v210, %v135
    %v227 = vsel %vm223, %v211, %v136
    %v228 = vsel %vm222, %v216, %v220
    %v229 = vsel %vm223, %v217, %v221
    %vm230 = vcmp.le.f32.partialorder %v228, 1e-30
    %vm231 = vcmp.le.f32.partialorder %v229, 1e-30
    %v232 = vsel %vm230, 0.0, %v224
    %v233 = vsel %vm231, 0.0, %v225
    %v234 = vsel %vm230, 1.0, %v226
    %v235 = vsel %vm231, 1.0, %v227
    %v236 = vsel %vm230, 1.0, %v228
    %v237 = vsel %vm231, 1.0, %v229
    %v238 = vsub.f32 %v117, %v123
    %v239 = vsub.f32 %v118, %v124
    %v240 = vsub.f32 %v120, %v126
    %v241 = vsub.f32 %v121, %v127
    %v242 = vmul.f32 %v204, %v238
    %v243 = vmul.f32 %v205, %v239
    %v244 = vmul.f32 %v206, %v240
    %v245 = vmul.f32 %v207, %v241
    %v246 = vadd.f32 %v242, %v244
    %v247 = vadd.f32 %v243, %v245
    %v248 = vmul.f32 %v232, %v238
    %v249 = vmul.f32 %v233, %v239
    %v250 = vmul.f32 %v234, %v240
    %v251 = vmul.f32 %v235, %v241
    %v252 = vadd.f32 %v248, %v250
    %v253 = vadd.f32 %v249, %v251
    %v254 = vmul.f32 %v246, %v246
    %v255 = vmul.f32 %v247, %v247
    %v256 = vrcp.pop %v208
    %v257 = vrcp.pop %v209
    %v258 = vmul.f32 %v254, %v256
    %v259 = vmul.f32 %v255, %v257
    %v260 = vmul.f32 %v252, %v252
    %v261 = vmul.f32 %v253, %v253
    %v262 = vrcp.pop %v236
    %v263 = vrcp.pop %v237
    %v264 = vmul.f32 %v260, %v262
    %v265 = vmul.f32 %v261, %v263
    %v266 = vmax.f32 %v172, 1e-30
    %v267 = vmax.f32 %v173, 1e-30
    %v268 = vrsqrt.pop %v266
    %v269 = vrsqrt.pop %v267
    %v270 = vmax.f32 %v176, 1e-30
    %v271 = vmax.f32 %v177, 1e-30
    %v272 = vrsqrt.pop %v270
    %v273 = vrsqrt.pop %v271
    %v274 = vadd.f32 %v268, %v269
    %v275 = vadd.f32 %v274, 0.0
    %v276 = vadd.f32 %v272, %v273
    %v277 = vadd.f32 %v276, 0.0
    %v278 = vadd.f32 %v258, %v259
    %v279 = vadd.f32 %v278, 0.0
    %v280 = vadd.f32 %v264, %v265
    %v281 = vadd.f32 %v280, 0.0
    %v282 = vadd.f32 %v140, %v141
    %v283 = vadd.f32 %v282, 0.0
    %v284 = vld [vmem:[%s1] sm:$0xff]
    %v285 = vadd.f32 %v284, %v275
    %286 = vst [vmem:[%s1] sm:$0xff] %v285
    %s287 = scalar_lea.vmem %s1, 8
    %v288 = vld [vmem:[%s287] sm:$0xff]
    %v289 = vadd.f32 %v288, %v277
    %290 = vst [vmem:[%s287] sm:$0xff] %v289
    %s291 = scalar_lea.vmem %s1, 16
    %v292 = vld [vmem:[%s291] sm:$0xff]
    %v293 = vadd.f32 %v292, %v279
    %294 = vst [vmem:[%s291] sm:$0xff] %v293
    %s295 = scalar_lea.vmem %s1, 24
    %v296 = vld [vmem:[%s295] sm:$0xff]
    %v297 = vadd.f32 %v296, %v281
    %298 = vst [vmem:[%s295] sm:$0xff] %v297
    %s299 = scalar_lea.vmem %s1, 32
    %v300 = vld [vmem:[%s299] sm:$0xff]
    %v301 = vadd.f32 %v300, %v283
    %302 = vst [vmem:[%s299] sm:$0xff] %v301
    // Predicated region
    $region10: #{star_loss.2} parent=1 // pred_check
      _
    $region11: #{star_loss.2} parent=1 // pred_check_branch
      %304 = sbr.rel (0) target = $region13
    $region12: #{star_loss.2} parent=1 // pred_region
      _
    $region13: #{star_loss.2} parent=1 // pred_fallthru
      _
    // Predicated region
    $region14: #{star_loss.2} parent=1 // pred_check
      _
    $region15: #{star_loss.2} parent=1 // pred_check_branch
      %306 = sbr.rel (0) target = $region17
    $region16: #{star_loss.2} parent=1 // pred_region
      _
    $region17: #{star_loss.2} parent=1 // pred_fallthru
      _

</llo_original>
